<compile_context>
chip_gen: v6e
topology: v6e:2x2x1
jax: 0.10.0
libtpu: 0.0.40
codegen_flags: <defaults>
</compile_context>

<pallas_src>
import functools
import numpy as np
import jax
import jax.numpy as jnp
from jax import lax
from jax.experimental import pallas as pl
from jax.experimental.pallas import tpu as pltpu

DIM_WARP = 32
EPS = 1e-5


def _round_up(a, b):
    return (a + b - 1) // b * b


def head_block_kernel(starts_ref, counts_ref, seg_ref, x_ref, wpre_ref, pmat_ref,
                      bg_ref, bv_ref, wpost_ref, bias_ref, out_ref, acc_ref, *,
                      n_valid):
    si = pl.program_id(0)            # segment-tile index ("parallel")
    k = pl.program_id(1)             # x-block step within this segment tile ("arbitrary")
    tile_s = acc_ref.shape[0]
    tile_n = x_ref.shape[0]

    @pl.when(k == 0)
    def _init():
        acc_ref[...] = jnp.zeros_like(acc_ref)

    # --- segment_csr(x, idxptr, 'sum') over only the x blocks this segment tile touches ---
    @pl.when(k < counts_ref[si])
    def _accum():
        xv = x_ref[...]                                       # (tile_n, W) f32
        if n_valid % tile_n != 0:                             # static: last x block is partial
            blk = starts_ref[si] + jnp.minimum(k, jnp.maximum(counts_ref[si] - 1, 0))
            rowg = blk * tile_n + lax.broadcasted_iota(jnp.int32, (tile_n, 1), 0)
            xv = jnp.where(rowg < n_valid, xv, 0.0)           # sanitize OOB rows (0*NaN != 0)
        # Cheap mask build: (tile_s,1) iota vs (1,tile_n) seg ids, single broadcast compare.
        seg_row = lax.broadcasted_iota(jnp.int32, (tile_s, 1), 0) + si * tile_s
        mask = (seg_row == seg_ref[...]).astype(jnp.bfloat16)  # (tile_s, tile_n), exact 0/1
        acc_ref[...] += jnp.dot(mask, xv.astype(jnp.bfloat16),
                                preferred_element_type=jnp.float32)

    # --- head epilogue once per segment tile, after its last x block.
    #     NOTE: relies on out_spec index_map being independent of k (block stays resident).
    @pl.when(k == pl.num_programs(1) - 1)
    def _epilogue():
        segsum = acc_ref[...]                                                    # (tile_s, W) f32
        # pre: DenseLayer(width -> width_norm) + GroupNorm(nhead, affine=False)
        h = jnp.dot(segsum, wpre_ref[...], preferred_element_type=jnp.float32)   # (tile_s, Wn)
        mean_b = jnp.dot(h, pmat_ref[...], preferred_element_type=jnp.float32)   # group mean
        d = h - mean_b
        var_b = jnp.dot(d * d, pmat_ref[...], preferred_element_type=jnp.float32)
        xn = d * lax.rsqrt(var_b + EPS)                                          # rsqrt -> EUP
        # gate (grouped conv + ReLU, dropout = eval identity) * value (grouped conv)
        gate = jnp.maximum(jnp.dot(xn, bg_ref[...], preferred_element_type=jnp.float32), 0.0)
        value = jnp.dot(xn, bv_ref[...], preferred_element_type=jnp.float32)
        # post DenseLayer(width_act -> 1) as VPU multiply + lane reduction, then (+bias)*5.6
        gv = gate * value * wpost_ref[...]
        xx = (jnp.sum(gv, axis=-1, keepdims=True) + bias_ref[0]) * 5.6           # (tile_s, 1)
        # Lane-dense fused store: [ xn | xx broadcast into the remaining lanes ].
        lanes_xx = out_ref.shape[1] - xn.shape[1]
        out_ref[...] = jnp.concatenate(
            [xn, jnp.broadcast_to(xx, (tile_s, lanes_xx))], axis=-1)


def head_block(x, idxptr, params, nhead, *, tile_s=64, tile_n=2048):
    """segment_csr(sum) + GatedLinearBlock head.  idxptr must be concrete (host-available)."""
    N, W = x.shape
    ip = np.asarray(jax.device_get(idxptr)).astype(np.int64)
    S = int(ip.shape[0]) - 1
    assert int(ip[0]) == 0 and np.all(np.diff(ip) >= 0) and int(ip[-1]) <= N, \
        "idxptr must be a CSR pointer with idxptr[-1] <= N (rows past idxptr[-1] are ignored)"
    Wn = params['wpre'].shape[0]             # width_norm
    Wa = params['bg'].shape[1]               # width_act
    w_out = _round_up(Wn + 1, 128)           # fused lane-dense output: [xn | xx ...]

    # ---- x tiling: single streamed pass over f32 x (cast to bf16 inside the kernel) ----
    tile_n = _round_up(max(tile_n, 128), 128)
    if N < tile_n:
        tile_n = max(128, _round_up(max(N, 1), 128))
    x_stream = x.astype(jnp.float32)
    if x_stream.shape[0] < tile_n:           # tiny inputs only: pad up to one full tile
        x_stream = jnp.pad(x_stream, ((0, tile_n - x_stream.shape[0]), (0, 0)))
    n_valid = x_stream.shape[0] if x_stream.shape[0] != N else N
    n_blocks = -(-x_stream.shape[0] // tile_n)
    n_pad = n_blocks * tile_n

    # ---- segment tiling ----
    tile_s = min(_round_up(max(tile_s, 8), 8), _round_up(max(S, 1), 8))
    s_pad = _round_up(max(S, 1), tile_s)
    s_tiles = s_pad // tile_s

    # Scalar-prefetched per-segment-tile x-block table (CSR rows => contiguous block range).
    starts = np.zeros((s_tiles,), np.int32)
    counts = np.zeros((s_tiles,), np.int32)
    for si in range(s_tiles):
        lo = int(ip[min(si * tile_s, S)])
        hi = int(ip[min((si + 1) * tile_s, S)])
        starts[si] = min(lo // tile_n, n_blocks - 1)
        counts[si] = (-(-hi // tile_n) - lo // tile_n) if hi > lo else 0
    k_max = max(1, int(counts.max()))

    # CSR -> per-row segment id, lane-dense (1, n_pad) int32; -1 marks invalid/pad rows.
    seg_np = np.full((n_pad,), -1, np.int32)
    seg_np[:N] = np.searchsorted(ip[1:], np.arange(N), side='right')
    seg_ids = jnp.asarray(seg_np).reshape(1, n_pad)

    # Group-averaging matrix (structural constant): P[c, c'] = 1/gsize iff same group.
    gsize = Wn // nhead
    rr = np.arange(Wn)
    pmat = jnp.asarray(((rr[:, None] // gsize) == (rr[None, :] // gsize))
                       .astype(np.float32) / gsize)

    wpre_t = params['wpre'].T.astype(jnp.float32)             # (W, Wn)
    wpost_row = params['wpost'].reshape(1, Wa).astype(jnp.float32)
    bias = params['bias'].reshape(1).astype(jnp.float32)

    def xblk(si, k, st, ct):
        # Clamp so repeated/empty steps re-point at the last valid block (DMA gets skipped
        # for unchanged block indices; compute is pl.when-guarded in the kernel).
        return st[si] + jnp.minimum(k, jnp.maximum(ct[si] - 1, 0))

    # Explicit scoped-VMEM limit with headroom (double-buffered x tile dominates).
    vmem_need = 4 * (2 * tile_n * (W + 1)
                     + 2 * (W * Wn + Wn * Wn + 2 * Wn * Wa + Wa)
                     + 2 * tile_s * w_out + tile_s * W)
    vmem_limit = int(min(max(32 << 20, 2 * vmem_need), 64 << 20))

    kernel = pl.pallas_call(
        functools.partial(head_block_kernel, n_valid=n_valid),
        out_shape=jax.ShapeDtypeStruct((s_pad, w_out), jnp.float32),
        grid_spec=pltpu.PrefetchScalarGridSpec(
            num_scalar_prefetch=2,                                  # starts, counts
            grid=(s_tiles, k_max),
            in_specs=[
                pl.BlockSpec((1, tile_n), lambda si, k, st, ct: (0, xblk(si, k, st, ct))),
                pl.BlockSpec((tile_n, W), lambda si, k, st, ct: (xblk(si, k, st, ct), 0)),
                pl.BlockSpec((W, Wn), lambda si, k, st, ct: (0, 0)),    # wpre^T
                pl.BlockSpec((Wn, Wn), lambda si, k, st, ct: (0, 0)),   # group-avg matrix
                pl.BlockSpec((Wn, Wa), lambda si, k, st, ct: (0, 0)),   # gate (block-diag)
                pl.BlockSpec((Wn, Wa), lambda si, k, st, ct: (0, 0)),   # value (block-diag)
                pl.BlockSpec((1, Wa), lambda si, k, st, ct: (0, 0)),    # wpost row
                pl.BlockSpec(memory_space=pltpu.MemorySpace.SMEM),      # bias scalar
            ],
            out_specs=pl.BlockSpec((tile_s, w_out), lambda si, k, st, ct: (si, 0)),
            scratch_shapes=[pltpu.VMEM((tile_s, W), jnp.float32)]),     # segsum accumulator
        compiler_params=pltpu.CompilerParams(
            dimension_semantics=("parallel", "arbitrary"),
            vmem_limit_bytes=vmem_limit),
    )
    out = kernel(jnp.asarray(starts), jnp.asarray(counts), seg_ids, x_stream,
                 wpre_t, pmat, params['bg'].astype(jnp.float32),
                 params['bv'].astype(jnp.float32), wpost_row, bias)
    xx = out[:S, Wn:Wn + 1]
    xn = out[:S, :Wn]
    return xx, xn


def init_params(key, width, nhead):
    """Deterministic synthetic parameters matching HeadBlock(width, nhead).__init__ shapes."""
    width_norm = DIM_WARP * nhead          # resca_norm = 1
    width_act = DIM_WARP * nhead           # resca_act = 1
    inpg = width_norm // nhead
    k1, k2, k3, k4 = jax.random.split(key, 4)
    wpre = jax.random.normal(k1, (width_norm, width), jnp.float32) * 0.1     # Conv1d(width, width_norm, 1)
    wg = jax.random.normal(k2, (width_act, inpg), jnp.float32) * 0.1         # grouped Conv1d, groups=nhead
    wv = jax.random.normal(k3, (width_act, inpg), jnp.float32) * 0.1
    wpost = jax.random.normal(k4, (1, width_act), jnp.float32) * 0.1         # Conv1d(width_act, 1, 1)
    bias = jnp.ones((1,), jnp.float32)                                       # nn.Parameter(ones(1))

    def block_diag(w):  # grouped 1x1 conv -> block-diagonal (Wn, Wa) matrix for right-multiplication
        out_ch, in_per_g = w.shape
        out_per_g = out_ch // nhead
        B = jnp.zeros((nhead * in_per_g, out_ch), jnp.float32)
        for g in range(nhead):
            blk = w[g * out_per_g:(g + 1) * out_per_g, :].T
            B = B.at[g * in_per_g:(g + 1) * in_per_g, g * out_per_g:(g + 1) * out_per_g].set(blk)
        return B

    return dict(wpre=wpre, wg=wg, wv=wv, bg=block_diag(wg), bv=block_diag(wv),
                wpost=wpost, bias=bias)


def reference(x, idxptr, p, nhead):
    """Pure-JAX reference mirroring the PyTorch forward (eval mode)."""
    ip = np.asarray(idxptr)
    S = len(ip) - 1
    segsum = jnp.stack([x[int(ip[s]):int(ip[s + 1])].sum(0) for s in range(S)])
    h = segsum @ p['wpre'].T
    Wn = h.shape[1]
    g = Wn // nhead
    hr = h.reshape(S, nhead, g)
    mu = hr.mean(-1, keepdims=True)
    var = ((hr - mu) ** 2).mean(-1, keepdims=True)
    xn = ((hr - mu) / jnp.sqrt(var + EPS)).reshape(S, Wn)
    xr = xn.reshape(S, nhead, g)
    wgr = p['wg'].reshape(nhead, -1, g)
    wvr = p['wv'].reshape(nhead, -1, g)
    gate = jnp.maximum(jnp.einsum('sgi,goi->sgo', xr, wgr), 0.0).reshape(S, -1)
    val = jnp.einsum('sgi,goi->sgo', xr, wvr).reshape(S, -1)
    xx = (gate * val) @ p['wpost'].T
    xx = (xx + p['bias']) * 5.6
    return xx, xn


if __name__ == "__main__":
    width, nhead = 64, 2
    key = jax.random.PRNGKey(0)
    kp, kx1, kx2 = jax.random.split(key, 3)
    params = init_params(kp, width, nhead)

    def check(x, idxptr, tile_s, tile_n, tag):
        xx, xn = head_block(x, idxptr, params, nhead, tile_s=tile_s, tile_n=tile_n)
        jax.block_until_ready((xx, xn))
        # Reference on the bf16-rounded x the kernel effectively consumes (f32 math downstream).
        x_eff = x.astype(jnp.bfloat16).astype(jnp.float32)
        xx_ref, xn_ref = reference(x_eff, idxptr, params, nhead)
        S = idxptr.shape[0] - 1
        assert xx.shape == (S, 1) and xn.shape == (S, DIM_WARP * nhead), tag
        assert jnp.allclose(xx, xx_ref, atol=5e-3, rtol=5e-3), f"xx mismatch ({tag})"
        assert jnp.allclose(xn, xn_ref, atol=5e-3, rtol=5e-3), f"xn mismatch ({tag})"

    # Case 1: tiny shapes (single x block, single segment tile).
    N1 = 16
    x1 = jax.random.normal(kx1, (N1, width), jnp.float32)
    idxptr1 = jnp.array([0, 3, 7, 12, 16], jnp.int32)          # (S+1,) CSR pointer, S=4
    check(x1, idxptr1, tile_s=8, tile_n=128, tag="case1")

    # Case 2: multi-block streaming with the data-dependent block table, partial tail block,
    #         empty segments, several segment tiles.
    N2 = 400
    x2 = jax.random.normal(kx2, (N2, width), jnp.float32)
    rs = np.random.RandomState(0)
    cuts = np.sort(rs.randint(0, N2 + 1, size=39))
    idxptr2 = jnp.asarray(np.concatenate([[0], cuts, [N2]]).astype(np.int32))  # S=40
    check(x2, idxptr2, tile_s=16, tile_n=128, tag="case2")

    print("KERNEL_OK")
</pallas_src>

<mosaic_0001>
module attributes {stable_mosaic.version = 11 : i64} {
  func.func @head_block_kernel(%arg0: i32, %arg1: i32, %arg2: memref<1xi32, #tpu.memory_space<smem>>, %arg3: memref<1xi32, #tpu.memory_space<smem>>, %arg4: memref<1x128xi32, #tpu.memory_space<vmem>>, %arg5: memref<128x64xf32, #tpu.memory_space<vmem>>, %arg6: memref<64x64xf32, #tpu.memory_space<vmem>>, %arg7: memref<64x64xf32, #tpu.memory_space<vmem>>, %arg8: memref<64x64xf32, #tpu.memory_space<vmem>>, %arg9: memref<64x64xf32, #tpu.memory_space<vmem>>, %arg10: memref<1x64xf32, #tpu.memory_space<vmem>>, %arg11: memref<1xf32, #tpu.memory_space<smem>>, %arg12: memref<8x128xf32, #tpu.memory_space<vmem>>, %arg13: memref<8x64xf32, #tpu.memory_space<vmem>>) attributes {dimension_semantics = [#tpu.dimension_semantics<parallel>, #tpu.dimension_semantics<arbitrary>], iteration_bounds = array<i64: 1, 1>, scalar_prefetch = 2 : i64, scratch_operands = 1 : i64, tpu.core_type = #tpu.core_type<tc>, window_params = [{transform_indices = @transform_0, window_bounds = array<i64: 1, 128>}, {transform_indices = @transform_1, window_bounds = array<i64: 128, 64>}, {pipeline_mode = #tpu.pipeline_mode<synchronous>, transform_indices = @transform_2, window_bounds = array<i64: 64, 64>}, {pipeline_mode = #tpu.pipeline_mode<synchronous>, transform_indices = @transform_3, window_bounds = array<i64: 64, 64>}, {pipeline_mode = #tpu.pipeline_mode<synchronous>, transform_indices = @transform_4, window_bounds = array<i64: 64, 64>}, {pipeline_mode = #tpu.pipeline_mode<synchronous>, transform_indices = @transform_5, window_bounds = array<i64: 64, 64>}, {pipeline_mode = #tpu.pipeline_mode<synchronous>, transform_indices = @transform_6, window_bounds = array<i64: 1, 64>}, {transform_indices = @transform_7, window_bounds = array<i64: 1>}, {transform_indices = @transform_8, window_bounds = array<i64: 8, 128>}]} {
    %c0_i32 = arith.constant 0 : i32
    %0 = arith.cmpi eq, %arg1, %c0_i32 : i32
    %1 = arith.extui %0 : i1 to i32
    %c0_i32_0 = arith.constant 0 : i32
    %2 = arith.cmpi ne, %1, %c0_i32_0 : i32
    scf.if %2 {
      %cst = arith.constant 0.000000e+00 : f32
      %11 = vector.broadcast %cst : f32 to vector<8x64xf32>
      %c0 = arith.constant 0 : index
      %c0_4 = arith.constant 0 : index
      %12 = vector.load %arg13[%c0, %c0_4] : memref<8x64xf32, #tpu.memory_space<vmem>>, vector<8x64xf32>
      tpu.vector_store %arg13[%c0, %c0_4], %11 {strides = array<i32>} : memref<8x64xf32, #tpu.memory_space<vmem>>, vector<8x64xf32>,
    } else {
    }
    %3 = arith.index_cast %arg0 : i32 to index
    %4 = memref.load %arg3[%3] : memref<1xi32, #tpu.memory_space<smem>>
    %5 = arith.cmpi slt, %arg1, %4 : i32
    %6 = arith.extui %5 : i1 to i32
    %c0_i32_1 = arith.constant 0 : i32
    %7 = arith.cmpi ne, %6, %c0_i32_1 : i32
    scf.if %7 {
      %c0 = arith.constant 0 : index
      %c0_4 = arith.constant 0 : index
      %11 = vector.load %arg5[%c0, %c0_4] : memref<128x64xf32, #tpu.memory_space<vmem>>, vector<128x64xf32>
      %12 = tpu.iota {dimensions = array<i32: 0>} : vector<8x1xi32>
      %c8_i32 = arith.constant 8 : i32
      %13 = arith.muli %arg0, %c8_i32 : i32
      %14 = vector.broadcast %13 : i32 to vector<8x1xi32>
      %15 = arith.addi %12, %14 : vector<8x1xi32>
      %c0_5 = arith.constant 0 : index
      %c0_6 = arith.constant 0 : index
      %16 = vector.load %arg4[%c0_5, %c0_6] : memref<1x128xi32, #tpu.memory_space<vmem>>, vector<1x128xi32>
      %17 = vector.broadcast %15 : vector<8x1xi32> to vector<8x128xi32>
      %18 = vector.broadcast %16 : vector<1x128xi32> to vector<8x128xi32>
      %19 = arith.cmpi eq, %17, %18 : vector<8x128xi32>
      %20 = arith.extui %19 : vector<8x128xi1> to vector<8x128xi32>
      %21 = arith.sitofp %20 : vector<8x128xi32> to vector<8x128xf32>
      %22 = arith.truncf %21 : vector<8x128xf32> to vector<8x128xbf16>
      %c0_7 = arith.constant 0 : index
      %c0_8 = arith.constant 0 : index
      %23 = vector.load %arg13[%c0_7, %c0_8] : memref<8x64xf32, #tpu.memory_space<vmem>>, vector<8x64xf32>
      %24 = arith.truncf %11 : vector<128x64xf32> to vector<128x64xbf16>
      %cst = arith.constant dense<0.000000e+00> : vector<8x64xf32>
      %25 = tpu.matmul %22, %24, %cst {dimension_numbers = #tpu.dot_dimension_numbers<[1], [0], [0], [1], [0, 0, 1, 1], [], []>} : vector<8x128xbf16>, vector<128x64xbf16>, vector<8x64xf32> -> vector<8x64xf32>
      %26 = arith.addf %23, %25 : vector<8x64xf32>
      %c0_9 = arith.constant 0 : index
      %c0_10 = arith.constant 0 : index
      %27 = vector.load %arg13[%c0_9, %c0_10] : memref<8x64xf32, #tpu.memory_space<vmem>>, vector<8x64xf32>
      tpu.vector_store %arg13[%c0_9, %c0_10], %26 {strides = array<i32>} : memref<8x64xf32, #tpu.memory_space<vmem>>, vector<8x64xf32>,
    } else {
    }
    %c0_i32_2 = arith.constant 0 : i32
    %8 = arith.cmpi eq, %arg1, %c0_i32_2 : i32
    %9 = arith.extui %8 : i1 to i32
    %c0_i32_3 = arith.constant 0 : i32
    %10 = arith.cmpi ne, %9, %c0_i32_3 : i32
    scf.if %10 {
      %c0 = arith.constant 0 : index
      %c0_4 = arith.constant 0 : index
      %11 = vector.load %arg13[%c0, %c0_4] : memref<8x64xf32, #tpu.memory_space<vmem>>, vector<8x64xf32>
      %c0_5 = arith.constant 0 : index
      %c0_6 = arith.constant 0 : index
      %12 = vector.load %arg6[%c0_5, %c0_6] : memref<64x64xf32, #tpu.memory_space<vmem>>, vector<64x64xf32>
      %cst = arith.constant dense<0.000000e+00> : vector<8x64xf32>
      %13 = tpu.matmul %11, %12, %cst {dimension_numbers = #tpu.dot_dimension_numbers<[1], [0], [0], [1], [0, 0, 1, 1], [], []>} : vector<8x64xf32>, vector<64x64xf32>, vector<8x64xf32> -> vector<8x64xf32>
      %c0_7 = arith.constant 0 : index
      %c0_8 = arith.constant 0 : index
      %14 = vector.load %arg7[%c0_7, %c0_8] : memref<64x64xf32, #tpu.memory_space<vmem>>, vector<64x64xf32>
      %cst_9 = arith.constant dense<0.000000e+00> : vector<8x64xf32>
      %15 = tpu.matmul %13, %14, %cst_9 {dimension_numbers = #tpu.dot_dimension_numbers<[1], [0], [0], [1], [0, 0, 1, 1], [], []>} : vector<8x64xf32>, vector<64x64xf32>, vector<8x64xf32> -> vector<8x64xf32>
      %16 = arith.subf %13, %15 : vector<8x64xf32>
      %17 = arith.mulf %16, %16 : vector<8x64xf32>
      %c0_10 = arith.constant 0 : index
      %c0_11 = arith.constant 0 : index
      %18 = vector.load %arg7[%c0_10, %c0_11] : memref<64x64xf32, #tpu.memory_space<vmem>>, vector<64x64xf32>
      %cst_12 = arith.constant dense<0.000000e+00> : vector<8x64xf32>
      %19 = tpu.matmul %17, %18, %cst_12 {dimension_numbers = #tpu.dot_dimension_numbers<[1], [0], [0], [1], [0, 0, 1, 1], [], []>} : vector<8x64xf32>, vector<64x64xf32>, vector<8x64xf32> -> vector<8x64xf32>
      %cst_13 = arith.constant 9.99999974E-6 : f32
      %20 = vector.broadcast %cst_13 : f32 to vector<8x64xf32>
      %21 = arith.addf %19, %20 : vector<8x64xf32>
      %22 = math.rsqrt %21 : vector<8x64xf32>
      %23 = arith.mulf %16, %22 : vector<8x64xf32>
      %c0_14 = arith.constant 0 : index
      %c0_15 = arith.constant 0 : index
      %24 = vector.load %arg8[%c0_14, %c0_15] : memref<64x64xf32, #tpu.memory_space<vmem>>, vector<64x64xf32>
      %cst_16 = arith.constant dense<0.000000e+00> : vector<8x64xf32>
      %25 = tpu.matmul %23, %24, %cst_16 {dimension_numbers = #tpu.dot_dimension_numbers<[1], [0], [0], [1], [0, 0, 1, 1], [], []>} : vector<8x64xf32>, vector<64x64xf32>, vector<8x64xf32> -> vector<8x64xf32>
      %cst_17 = arith.constant 0.000000e+00 : f32
      %26 = vector.broadcast %cst_17 : f32 to vector<8x64xf32>
      %27 = arith.maximumf %25, %26 : vector<8x64xf32>
      %c0_18 = arith.constant 0 : index
      %c0_19 = arith.constant 0 : index
      %28 = vector.load %arg9[%c0_18, %c0_19] : memref<64x64xf32, #tpu.memory_space<vmem>>, vector<64x64xf32>
      %cst_20 = arith.constant dense<0.000000e+00> : vector<8x64xf32>
      %29 = tpu.matmul %23, %28, %cst_20 {dimension_numbers = #tpu.dot_dimension_numbers<[1], [0], [0], [1], [0, 0, 1, 1], [], []>} : vector<8x64xf32>, vector<64x64xf32>, vector<8x64xf32> -> vector<8x64xf32>
      %30 = arith.mulf %27, %29 : vector<8x64xf32>
      %c0_21 = arith.constant 0 : index
      %c0_22 = arith.constant 0 : index
      %31 = vector.load %arg10[%c0_21, %c0_22] : memref<1x64xf32, #tpu.memory_space<vmem>>, vector<1x64xf32>
      %32 = vector.broadcast %31 : vector<1x64xf32> to vector<8x64xf32>
      %33 = arith.mulf %30, %32 : vector<8x64xf32>
      %cst_23 = arith.constant dense<0.000000e+00> : vector<8xf32>
      %34 = vector.multi_reduction <add>, %33, %cst_23 [1] : vector<8x64xf32> to vector<8xf32>
      %35 = vector.shape_cast %34 : vector<8xf32> to vector<8x1xf32>
      %c0_24 = arith.constant 0 : index
      %36 = memref.load %arg11[%c0_24] : memref<1xf32, #tpu.memory_space<smem>>
      %37 = vector.broadcast %36 : f32 to vector<8x1xf32>
      %38 = arith.addf %35, %37 : vector<8x1xf32>
      %cst_25 = arith.constant 5.600000e+00 : f32
      %39 = vector.broadcast %cst_25 : f32 to vector<8x1xf32>
      %40 = arith.mulf %38, %39 : vector<8x1xf32>
      %41 = vector.shape_cast %40 : vector<8x1xf32> to vector<8x1xf32>
      %42 = vector.broadcast %41 : vector<8x1xf32> to vector<8x64xf32>
      %43 = tpu.concatenate %23, %42 in 1 : vector<8x64xf32>, vector<8x64xf32> -> vector<8x128xf32>
      %c0_26 = arith.constant 0 : index
      %c0_27 = arith.constant 0 : index
      %44 = vector.load %arg12[%c0_26, %c0_27] : memref<8x128xf32, #tpu.memory_space<vmem>>, vector<8x128xf32>
      tpu.vector_store %arg12[%c0_26, %c0_27], %43 {strides = array<i32>} : memref<8x128xf32, #tpu.memory_space<vmem>>, vector<8x128xf32>,
    } else {
    }
    return
  }
  func.func @transform_0(%arg0: i32, %arg1: i32, %arg2: memref<1xi32, #tpu.memory_space<smem>>, %arg3: memref<1xi32, #tpu.memory_space<smem>>) -> (i32, i32) {
    %0 = arith.index_cast %arg0 : i32 to index
    %1 = memref.load %arg2[%0] : memref<1xi32, #tpu.memory_space<smem>>
    %2 = arith.index_cast %arg0 : i32 to index
    %3 = memref.load %arg3[%2] : memref<1xi32, #tpu.memory_space<smem>>
    %c1_i32 = arith.constant 1 : i32
    %4 = arith.subi %3, %c1_i32 : i32
    %c0_i32 = arith.constant 0 : i32
    %5 = arith.maxsi %4, %c0_i32 : i32
    %6 = arith.minsi %arg1, %5 : i32
    %7 = arith.addi %1, %6 : i32
    %c0_i32_0 = arith.constant 0 : i32
    %c0_i32_1 = arith.constant 0 : i32
    return %c0_i32_0, %7 : i32, i32
  }
  func.func @transform_1(%arg0: i32, %arg1: i32, %arg2: memref<1xi32, #tpu.memory_space<smem>>, %arg3: memref<1xi32, #tpu.memory_space<smem>>) -> (i32, i32) {
    %0 = arith.index_cast %arg0 : i32 to index
    %1 = memref.load %arg2[%0] : memref<1xi32, #tpu.memory_space<smem>>
    %2 = arith.index_cast %arg0 : i32 to index
    %3 = memref.load %arg3[%2] : memref<1xi32, #tpu.memory_space<smem>>
    %c1_i32 = arith.constant 1 : i32
    %4 = arith.subi %3, %c1_i32 : i32
    %c0_i32 = arith.constant 0 : i32
    %5 = arith.maxsi %4, %c0_i32 : i32
    %6 = arith.minsi %arg1, %5 : i32
    %7 = arith.addi %1, %6 : i32
    %c0_i32_0 = arith.constant 0 : i32
    %c0_i32_1 = arith.constant 0 : i32
    return %7, %c0_i32_0 : i32, i32
  }
  func.func @transform_2(%arg0: i32, %arg1: i32, %arg2: memref<1xi32, #tpu.memory_space<smem>>, %arg3: memref<1xi32, #tpu.memory_space<smem>>) -> (i32, i32) {
    %c0_i32 = arith.constant 0 : i32
    %c0_i32_0 = arith.constant 0 : i32
    %c0_i32_1 = arith.constant 0 : i32
    return %c0_i32, %c0_i32_0 : i32, i32
  }
  func.func @transform_3(%arg0: i32, %arg1: i32, %arg2: memref<1xi32, #tpu.memory_space<smem>>, %arg3: memref<1xi32, #tpu.memory_space<smem>>) -> (i32, i32) {
    %c0_i32 = arith.constant 0 : i32
    %c0_i32_0 = arith.constant 0 : i32
    %c0_i32_1 = arith.constant 0 : i32
    return %c0_i32, %c0_i32_0 : i32, i32
  }
  func.func @transform_4(%arg0: i32, %arg1: i32, %arg2: memref<1xi32, #tpu.memory_space<smem>>, %arg3: memref<1xi32, #tpu.memory_space<smem>>) -> (i32, i32) {
    %c0_i32 = arith.constant 0 : i32
    %c0_i32_0 = arith.constant 0 : i32
    %c0_i32_1 = arith.constant 0 : i32
    return %c0_i32, %c0_i32_0 : i32, i32
  }
  func.func @transform_5(%arg0: i32, %arg1: i32, %arg2: memref<1xi32, #tpu.memory_space<smem>>, %arg3: memref<1xi32, #tpu.memory_space<smem>>) -> (i32, i32) {
    %c0_i32 = arith.constant 0 : i32
    %c0_i32_0 = arith.constant 0 : i32
    %c0_i32_1 = arith.constant 0 : i32
    return %c0_i32, %c0_i32_0 : i32, i32
  }
  func.func @transform_6(%arg0: i32, %arg1: i32, %arg2: memref<1xi32, #tpu.memory_space<smem>>, %arg3: memref<1xi32, #tpu.memory_space<smem>>) -> (i32, i32) {
    %c0_i32 = arith.constant 0 : i32
    %c0_i32_0 = arith.constant 0 : i32
    %c0_i32_1 = arith.constant 0 : i32
    return %c0_i32, %c0_i32_0 : i32, i32
  }
  func.func @transform_7(%arg0: i32, %arg1: i32, %arg2: memref<1xi32, #tpu.memory_space<smem>>, %arg3: memref<1xi32, #tpu.memory_space<smem>>) -> i32 {
    %c0_i32 = arith.constant 0 : i32
    %c0_i32_0 = arith.constant 0 : i32
    return %c0_i32 : i32
  }
  func.func @transform_8(%arg0: i32, %arg1: i32, %arg2: memref<1xi32, #tpu.memory_space<smem>>, %arg3: memref<1xi32, #tpu.memory_space<smem>>) -> (i32, i32) {
    %c0_i32 = arith.constant 0 : i32
    %c0_i32_0 = arith.constant 0 : i32
    return %arg0, %c0_i32 : i32, i32
  }
}

</mosaic_0001>

<llo_original>
// kernel: tpu_custom_call.1
$region0: #{tpu_custom_call.1}
  #allocation0 [shape = 'u32[]', space=smem, size = 0x4, offset = 0x4, fixed_abs, tag = 'smem constant byte address 0x4 - core index']
  #allocation1 [shape = 'u32[144,128]{1,0:T(1,128)}', space=vmem, size = 0x12000, scoped, tag = 'internal scratch']
  #allocation2 [shape = 'f32[8,64]{1,0:T(8,128)}', space=vmem, size = 0x1000, scoped, tag = 'scratch operand']
  #allocation3 [shape = 's32[1]{0}', space=sflag, size = 0x4, scoped, tag = 'scoped memory for tpu_custom_call.1']
  #allocation4 [shape = 's32[1]{0:T(128)S(6)}', space=smem, size = 0x200, scoped, tag = 'prefetched SMEM operand 0']
  #allocation5 [shape = 's32[1]{0:T(128)S(6)}', space=smem, size = 0x200, scoped, tag = 'prefetched SMEM operand 1']
  #allocation6 [shape = 'f32[1]{0:T(128)S(6)}', space=smem, size = 0x200, scoped, tag = 'scoped memory for tpu_custom_call.1']
  %s0 = inlined_call_operand.<no memory space> [shape: s32[1], index: 0, kind: input, shape index: {}]
  %s1 = inlined_call_operand.<no memory space> [shape: s32[1], index: 1, kind: input, shape index: {}]
  %s2 = inlined_call_operand.vmem [shape: s32[1,128], index: 2, kind: input, shape index: {}]
  %s3 = inlined_call_operand.vmem [shape: f32[128,64], index: 3, kind: input, shape index: {}]
  %s4 = inlined_call_operand.vmem [shape: f32[64,64], index: 4, kind: input, shape index: {}]
  %s5 = inlined_call_operand.vmem [shape: f32[64,64], index: 5, kind: input, shape index: {}]
  %s6 = inlined_call_operand.vmem [shape: f32[64,64], index: 6, kind: input, shape index: {}]
  %s7 = inlined_call_operand.hbm [shape: f32[64,64], index: 7, kind: input, shape index: {}]
  %s8 = inlined_call_operand.vmem [shape: f32[1,64], index: 8, kind: input, shape index: {}]
  %s9 = inlined_call_operand.<no memory space> [shape: f32[1], index: 9, kind: input, shape index: {}]
  %s10 = inlined_call_operand.hbm [shape: f32[8,128], index: 10, kind: output, shape index: {}]
  %s11 = sld [smem:[#allocation0]]
  $region58: #{tpu_custom_call.1} parent=0
    _
  %s13 = ssub.s32 1, %s11
  %s14 = scalar_select 0, %s13, %s11
  %15 = sst [smem:[#allocation4]] %s0
  %16 = sst [smem:[#allocation5]] %s1
  %17 = sst [smem:[#allocation6]] %s9
  $region1: #{tpu_custom_call.1} parent=0
    #allocation7 [shape = 'u8[32768]{0}', space=vmem, size = 0x8000, scoped, tag = 'input window, operand 7, single buffered']
    #allocation8 [shape = 's32[1]{0}', space=sflag, size = 0x4, scoped, tag = 'scoped memory for tpu_custom_call.1']
    #allocation9 [shape = 's32[1]{0}', space=sflag, size = 0x4, scoped, tag = 'scoped memory for tpu_custom_call.1']
    #allocation10 [shape = 'u8[4096]{0}', space=vmem, size = 0x1000, scoped, tag = 'output window, operand 0, single buffered']
    %18 = vsyncpa [#allocation8], 0
    %19 = vsyncpa [#allocation9], 0
    // Predicated region
    $region2: #{tpu_custom_call.1} parent=1 // pred_check
      _
    $region3: #{tpu_custom_call.1} parent=1 // pred_check_branch
      %21 = sbr.rel (0) target = $region5
    $region4: #{tpu_custom_call.1} parent=1 // pred_region
      %s22 = sld [smem:[#allocation4]]
      %s23 = sld [smem:[#allocation5]]
      %s24 = ssub.s32 %s23, 1
      %p25 = scmp.gt.s32.totalorder %s24, 0
      %s26 = scalar_select %p25, %s24, 0
      %p27 = scmp.lt.s32.totalorder 0, %s26
      %s28 = scalar_select %p27, 0, %s26
      %s29 = sadd.s32 %s22, %s28
      %p30 = scmp.lt.s32.totalorder %s29, 0
      %s31 = scalar_select %p30, %s29, 0
      %s32 = scalar_lea.vmem %s2, %s31
      %s33 = sld [smem:[#allocation4]]
      %s34 = sld [smem:[#allocation5]]
      %s35 = ssub.s32 %s34, 1
      %p36 = scmp.gt.s32.totalorder %s35, 0
      %s37 = scalar_select %p36, %s35, 0
      %p38 = scmp.lt.s32.totalorder 0, %s37
      %s39 = scalar_select %p38, 0, %s37
      %s40 = sadd.s32 %s33, %s39
    $region5: #{tpu_custom_call.1} parent=1 // pred_fallthru
      _
    // Predicated region
    $region6: #{tpu_custom_call.1} parent=1 // pred_check
      _
    $region7: #{tpu_custom_call.1} parent=1 // pred_check_branch
      %42 = sbr.rel (0) target = $region9
    $region8: #{tpu_custom_call.1} parent=1 // pred_region
      %s43 = sld [smem:[#allocation4]]
      %s44 = sld [smem:[#allocation5]]
      %s45 = ssub.s32 %s44, 1
      %p46 = scmp.gt.s32.totalorder %s45, 0
      %s47 = scalar_select %p46, %s45, 0
      %p48 = scmp.lt.s32.totalorder 0, %s47
      %s49 = scalar_select %p48, 0, %s47
      %s50 = sadd.s32 %s43, %s49
      %s51 = smul.u32 16, %s50
      %p52 = scmp.lt.s32.totalorder %s51, 15
      %s53 = scalar_select %p52, %s51, 15
      %s54 = smul.addr %s53, 8
      %s55 = scalar_lea.vmem %s3, %s54
      %s56 = sld [smem:[#allocation4]]
      %s57 = sld [smem:[#allocation5]]
      %s58 = ssub.s32 %s57, 1
      %p59 = scmp.gt.s32.totalorder %s58, 0
      %s60 = scalar_select %p59, %s58, 0
      %p61 = scmp.lt.s32.totalorder 0, %s60
      %s62 = scalar_select %p61, 0, %s60
      %s63 = sadd.s32 %s56, %s62
      %s64 = smul.u32 16, %s63
    $region9: #{tpu_custom_call.1} parent=1 // pred_fallthru
      _
    // Predicated region
    $region10: #{tpu_custom_call.1} parent=1 // pred_check
      _
    $region11: #{tpu_custom_call.1} parent=1 // pred_check_branch
      %66 = sbr.rel (0) target = $region13
    $region12: #{tpu_custom_call.1} parent=1 // pred_region
      _
    $region13: #{tpu_custom_call.1} parent=1 // pred_fallthru
      _
    // Predicated region
    $region14: #{tpu_custom_call.1} parent=1 // pred_check
      _
    $region15: #{tpu_custom_call.1} parent=1 // pred_check_branch
      %68 = sbr.rel (0) target = $region17
    $region16: #{tpu_custom_call.1} parent=1 // pred_region
      _
    $region17: #{tpu_custom_call.1} parent=1 // pred_fallthru
      _
    // Predicated region
    $region18: #{tpu_custom_call.1} parent=1 // pred_check
      _
    $region19: #{tpu_custom_call.1} parent=1 // pred_check_branch
      %70 = sbr.rel (0) target = $region21
    $region20: #{tpu_custom_call.1} parent=1 // pred_region
      _
    $region21: #{tpu_custom_call.1} parent=1 // pred_fallthru
      _
    // Predicated region
    $region22: #{tpu_custom_call.1} parent=1 // pred_check
      _
    $region23: #{tpu_custom_call.1} parent=1 // pred_check_branch
      %72 = sbr.rel (0) target = $region25
    $region24: #{tpu_custom_call.1} parent=1 // pred_region
      %s74 = ssub.s32 1024, 1024
      %75 = vsyncadd [#allocation8], %s74
      %s76 = sshll.u32 [#allocation7], 4
      %s77 = int_to_ptr.vmem [resolvable:$true] %s76
      %82 = dma.hbm_to_vmem [thread:$0]  %s7, 1024, %s77, [#allocation8], 128, 128, 8
    $region25: #{tpu_custom_call.1} parent=1 // pred_fallthru
      _
    // Predicated region
    $region26: #{tpu_custom_call.1} parent=1 // pred_check
      _
    $region27: #{tpu_custom_call.1} parent=1 // pred_check_branch
      %84 = sbr.rel (0) target = $region29
    $region28: #{tpu_custom_call.1} parent=1 // pred_region
      _
    $region29: #{tpu_custom_call.1} parent=1 // pred_fallthru
      _
    // Predicated region
    $region30: #{tpu_custom_call.1} parent=1 // pred_check
      _
    $region31: #{tpu_custom_call.1} parent=1 // pred_check_branch
      %86 = sbr.rel (0) target = $region33
    $region32: #{tpu_custom_call.1} parent=1 // pred_region
      _
    $region33: #{tpu_custom_call.1} parent=1 // pred_fallthru
      _
    // Predicated region
    $region34: #{tpu_custom_call.1} parent=1 // pred_check
      _
    $region35: #{tpu_custom_call.1} parent=1 // pred_check_branch
      %88 = sbr.rel (0) target = $region37
    $region36: #{tpu_custom_call.1} parent=1 // pred_region
      %89 = dma.done [#allocation8], 1024
    $region37: #{tpu_custom_call.1} parent=1 // pred_fallthru
      _
    %s90 = sld [smem:[#allocation4]]
    %s91 = sld [smem:[#allocation5]]
    %s92 = ssub.s32 %s91, 1
    %p93 = scmp.gt.s32.totalorder %s92, 0
    %s94 = scalar_select %p93, %s92, 0
    %p95 = scmp.lt.s32.totalorder 0, %s94
    %s96 = scalar_select %p95, 0, %s94
    %s97 = sadd.s32 %s90, %s96
    %p98 = scmp.lt.s32.totalorder %s97, 0
    %s99 = scalar_select %p98, %s97, 0
    %s100 = scalar_lea.vmem %s2, %s99
    %s101 = sld [smem:[#allocation4]]
    %s102 = sld [smem:[#allocation5]]
    %s103 = ssub.s32 %s102, 1
    %p104 = scmp.gt.s32.totalorder %s103, 0
    %s105 = scalar_select %p104, %s103, 0
    %p106 = scmp.lt.s32.totalorder 0, %s105
    %s107 = scalar_select %p106, 0, %s105
    %s108 = sadd.s32 %s101, %s107
    %s109 = smul.u32 16, %s108
    %p110 = scmp.lt.s32.totalorder %s109, 15
    %s111 = scalar_select %p110, %s109, 15
    %s112 = smul.addr %s111, 8
    %s113 = scalar_lea.vmem %s3, %s112
    %s114 = sld [smem:[#allocation4]]
    %s115 = sld [smem:[#allocation5]]
    %s116 = ssub.s32 %s115, 1
    %p117 = scmp.gt.s32.totalorder %s116, 0
    %s118 = scalar_select %p117, %s116, 0
    %p119 = scmp.lt.s32.totalorder 0, %s118
    %s120 = scalar_select %p119, 0, %s118
    %s121 = sadd.s32 %s114, %s120
    %p122 = scmp.lt.s32.totalorder %s121, 0
    %s123 = scalar_select %p122, %s121, 0
    %s124 = scalar_lea.vmem %s2, %s123
    %s125 = sld [smem:[#allocation4]]
    %s126 = sld [smem:[#allocation5]]
    %s127 = ssub.s32 %s126, 1
    %p128 = scmp.gt.s32.totalorder %s127, 0
    %s129 = scalar_select %p128, %s127, 0
    %p130 = scmp.lt.s32.totalorder 0, %s129
    %s131 = scalar_select %p130, 0, %s129
    %s132 = sadd.s32 %s125, %s131
    %s133 = sld [smem:[#allocation4]]
    %s134 = sld [smem:[#allocation5]]
    %s135 = ssub.s32 %s134, 1
    %p136 = scmp.gt.s32.totalorder %s135, 0
    %s137 = scalar_select %p136, %s135, 0
    %p138 = scmp.lt.s32.totalorder 0, %s137
    %s139 = scalar_select %p138, 0, %s137
    %s140 = sadd.s32 %s133, %s139
    %s141 = smul.u32 16, %s140
    %p142 = scmp.lt.s32.totalorder %s141, 15
    %s143 = scalar_select %p142, %s141, 15
    %s144 = smul.addr %s143, 8
    %s145 = scalar_lea.vmem %s3, %s144
    %s146 = sld [smem:[#allocation4]]
    %s147 = sld [smem:[#allocation5]]
    %s148 = ssub.s32 %s147, 1
    %p149 = scmp.gt.s32.totalorder %s148, 0
    %s150 = scalar_select %p149, %s148, 0
    %p151 = scmp.lt.s32.totalorder 0, %s150
    %s152 = scalar_select %p151, 0, %s150
    %s153 = sadd.s32 %s146, %s152
    %s154 = smul.u32 16, %s153
    %p156 = scmp.eq.s32.totalorder 0, 0
    // Predicated region
    $region38: #{tpu_custom_call.1} parent=1 // pred_check
      %p157 = pneg %p156
    $region39: #{tpu_custom_call.1} parent=1 // pred_check_branch
      %159 = sbr.rel (%p157) target = $region41
    $region40: #{tpu_custom_call.1} parent=1 // pred_region
      %vm160 = vcmask 523264
      %161 = vst.msk [vmem:[#allocation2] sm:$0xff] %vm160, 0.0
    $region41: #{tpu_custom_call.1} parent=1 // pred_fallthru
      _
    %s162 = sld [smem:[#allocation5]]
    %p163 = scmp.lt.s32.totalorder 0, %s162
    // Predicated region
    $region42: #{tpu_custom_call.1} parent=1 // pred_check
      %p164 = pneg %p163
    $region43: #{tpu_custom_call.1} parent=1 // pred_check_branch
      %166 = sbr.rel (%p164) target = $region45
    $region44: #{tpu_custom_call.1} parent=1 // pred_region
      %v167 = vld [vmem:[%s145] sm:$0xff]
      %v168 = vld [vmem:[%s145 + $0x8] sm:$0xff]
      %v169 = vld [vmem:[%s145 + $0x10] sm:$0xff]
      %v170 = vld [vmem:[%s145 + $0x18] sm:$0xff]
      %v171 = vld [vmem:[%s145 + $0x20] sm:$0xff]
      %v172 = vld [vmem:[%s145 + $0x28] sm:$0xff]
      %v173 = vld [vmem:[%s145 + $0x30] sm:$0xff]
      %v174 = vld [vmem:[%s145 + $0x38] sm:$0xff]
      %v175 = vld [vmem:[%s145 + $0x40] sm:$0xff]
      %v176 = vld [vmem:[%s145 + $0x48] sm:$0xff]
      %v177 = vld [vmem:[%s145 + $0x50] sm:$0xff]
      %v178 = vld [vmem:[%s145 + $0x58] sm:$0xff]
      %v179 = vld [vmem:[%s145 + $0x60] sm:$0xff]
      %v180 = vld [vmem:[%s145 + $0x68] sm:$0xff]
      %v181 = vld [vmem:[%s145 + $0x70] sm:$0xff]
      %v182 = vld [vmem:[%s145 + $0x78] sm:$0xff]
      %v183 = vlaneseq
      %v184 = vshrl.u32 %v183, 7
      %s185 = smul.u32 0, 8
      %v186 = vstv %s185
      %v187 = vadd.s32 %v184, %v186
      %v188 = vld [vmem:[%s124] sm:$0x1]
      %v189 = vlaneseq
      %v190 = vshrl.u32 %v189, 7
      %v191 = vsub.s32 0, %v190
      %v192 = vrot.slane %v188, %v191
      %vm193 = vcmp.eq.s32.totalorder %v187, %v192
      %v194 = vsel %vm193, 1, 0
      %v195 = vcvt.s32.f32 %v194
      %v196 = vpack.c.bf16 %v195, %v195
      %v197 = vld [vmem:[#allocation2] sm:$0xff]
      %v198 = vpack.c.bf16 %v168, %v167
      %v199 = vpack.c.bf16 %v170, %v169
      %v200 = vpack.c.bf16 %v172, %v171
      %v201 = vpack.c.bf16 %v174, %v173
      %v202 = vpack.c.bf16 %v176, %v175
      %v203 = vpack.c.bf16 %v178, %v177
      %v204 = vpack.c.bf16 %v180, %v179
      %v205 = vpack.c.bf16 %v182, %v181
      %206 = vmatprep.subr.bf16.mxu0 0
      %207 = vmatpush1.bf16.msra.mxu0 %v205
      %208 = vmatprep.subr.bf16.mxu0 0
      %209 = vmatpush1.bf16.msra.mxu0 %v204
      %210 = vmatprep.subr.bf16.mxu0 0
      %211 = vmatpush1.bf16.msra.mxu0 %v203
      %212 = vmatprep.subr.bf16.mxu0 0
      %213 = vmatpush1.bf16.msra.mxu0 %v202
      %214 = vmatprep.subr.bf16.mxu0 0
      %215 = vmatpush1.bf16.msra.mxu0 %v201
      %216 = vmatprep.subr.bf16.mxu0 0
      %217 = vmatpush1.bf16.msra.mxu0 %v200
      %218 = vmatprep.subr.bf16.mxu0 0
      %219 = vmatpush1.bf16.msra.mxu0 %v199
      %220 = vmatprep.subr.bf16.mxu0 0
      %221 = vmatpush1.bf16.msra.mxu0 %v198
      %222 = vmatprep.subr.bf16.mxu0 0
      %223 = vmatpush2.bf16.msra.mxu0 0
      %224 = vmatprep.subr.bf16.mxu0 0
      %225 = vmatpush2.bf16.msra.mxu0 0
      %226 = vmatprep.subr.bf16.mxu0 0
      %227 = vmatpush2.bf16.msra.mxu0 0
      %228 = vmatprep.subr.bf16.mxu0 0
      %229 = vmatpush2.bf16.msra.mxu0 0
      %230 = vmatprep.subr.bf16.mxu0 0
      %231 = vmatpush2.bf16.msra.mxu0 0
      %232 = vmatprep.subr.bf16.mxu0 0
      %233 = vmatpush2.bf16.msra.mxu0 0
      %234 = vmatprep.subr.bf16.mxu0 0
      %235 = vmatpush2.bf16.msra.mxu0 0
      %236 = vmatprep.subr.bf16.mxu0 0
      %237 = vmatpush2.bf16.msra.mxu0 0
      %238 = vmatprep.mubr.bf16.mxu0 0
      %239 = vmatmul.mubr.bf16.gmra.mxu0 %v196
      %v240 = vpop.f32.mrf.mxu0
      %v241 = vadd.f32 0.0, %v240
      %v242 = vpop.f32.mrf.mxu0
      %v243 = vpop.f32.mrf.mxu0
      %v244 = vpop.f32.mrf.mxu0
      %245 = vdwg.mxu0
      %v246 = vadd.f32 %v197, %v241
      %vm247 = vcmask 523264
      %248 = vst.msk [vmem:[#allocation2] sm:$0xff] %vm247, %v246
    $region45: #{tpu_custom_call.1} parent=1 // pred_fallthru
      _
    // Predicated region
    $region46: #{tpu_custom_call.1} parent=1 // pred_check
      %p249 = pneg %p156
    $region47: #{tpu_custom_call.1} parent=1 // pred_check_branch
      %251 = sbr.rel (%p249) target = $region49
    $region48: #{tpu_custom_call.1} parent=1 // pred_region
      %v252 = vld [vmem:[#allocation2] sm:$0xff]
      %v253 = vld [vmem:[%s4] sm:$0xff]
      %v254 = vld [vmem:[%s4 + $0x8] sm:$0xff]
      %v255 = vld [vmem:[%s4 + $0x10] sm:$0xff]
      %v256 = vld [vmem:[%s4 + $0x18] sm:$0xff]
      %v257 = vld [vmem:[%s4 + $0x20] sm:$0xff]
      %v258 = vld [vmem:[%s4 + $0x28] sm:$0xff]
      %v259 = vld [vmem:[%s4 + $0x30] sm:$0xff]
      %v260 = vld [vmem:[%s4 + $0x38] sm:$0xff]
      %vm261 = vcmask 523264
      %v263 = vsel %vm261, %v252, 0
      %265 = vmatprep.subr.mxu0 0.0
      %266 = vmatpush1.msra.mxu0 0.0
      %267 = vmatprep.subr.mxu0 0.0
      %268 = vmatpush1.msra.mxu0 0.0
      %269 = vmatprep.subr.mxu0 0.0
      %270 = vmatpush1.msra.mxu0 0.0
      %271 = vmatprep.subr.mxu0 0.0
      %272 = vmatpush1.msra.mxu0 0.0
      %273 = vmatprep.subr.mxu0 0.0
      %274 = vmatpush1.msra.mxu0 0.0
      %275 = vmatprep.subr.mxu0 0.0
      %276 = vmatpush1.msra.mxu0 0.0
      %277 = vmatprep.subr.mxu0 0.0
      %278 = vmatpush1.msra.mxu0 0.0
      %279 = vmatprep.subr.mxu0 0.0
      %280 = vmatpush1.msra.mxu0 0.0
      %281 = vmatprep.subr.mxu0 0.0
      %282 = vmatpush1.msra.mxu0 %v260
      %283 = vmatprep.subr.mxu0 0.0
      %284 = vmatpush1.msra.mxu0 %v259
      %285 = vmatprep.subr.mxu0 0.0
      %286 = vmatpush1.msra.mxu0 %v258
      %287 = vmatprep.subr.mxu0 0.0
      %288 = vmatpush1.msra.mxu0 %v257
      %289 = vmatprep.subr.mxu0 0.0
      %290 = vmatpush1.msra.mxu0 %v256
      %291 = vmatprep.subr.mxu0 0.0
      %292 = vmatpush1.msra.mxu0 %v255
      %293 = vmatprep.subr.mxu0 0.0
      %294 = vmatpush1.msra.mxu0 %v254
      %295 = vmatprep.subr.mxu0 0.0
      %296 = vmatpush1.msra.mxu0 %v253
      %297 = vmatprep.subr.mxu0 0.0
      %298 = vmatpush2.msra.mxu0 0.0
      %299 = vmatprep.subr.mxu0 0.0
      %300 = vmatpush2.msra.mxu0 0.0
      %301 = vmatprep.subr.mxu0 0.0
      %302 = vmatpush2.msra.mxu0 0.0
      %303 = vmatprep.subr.mxu0 0.0
      %304 = vmatpush2.msra.mxu0 0.0
      %305 = vmatprep.subr.mxu0 0.0
      %306 = vmatpush2.msra.mxu0 0.0
      %307 = vmatprep.subr.mxu0 0.0
      %308 = vmatpush2.msra.mxu0 0.0
      %309 = vmatprep.subr.mxu0 0.0
      %310 = vmatpush2.msra.mxu0 0.0
      %311 = vmatprep.subr.mxu0 0.0
      %312 = vmatpush2.msra.mxu0 0.0
      %313 = vmatprep.subr.mxu0 0.0
      %314 = vmatpush2.msra.mxu0 0.0
      %315 = vmatprep.subr.mxu0 0.0
      %316 = vmatpush2.msra.mxu0 0.0
      %317 = vmatprep.subr.mxu0 0.0
      %318 = vmatpush2.msra.mxu0 0.0
      %319 = vmatprep.subr.mxu0 0.0
      %320 = vmatpush2.msra.mxu0 0.0
      %321 = vmatprep.subr.mxu0 0.0
      %322 = vmatpush2.msra.mxu0 0.0
      %323 = vmatprep.subr.mxu0 0.0
      %324 = vmatpush2.msra.mxu0 0.0
      %325 = vmatprep.subr.mxu0 0.0
      %326 = vmatpush2.msra.mxu0 0.0
      %327 = vmatprep.subr.mxu0 0.0
      %328 = vmatpush2.msra.mxu0 0.0
      %329 = vmatprep.mubr.f32.mxu0 0.0
      %330 = vmatmul.mubr.f32.gmra.mxu0 %v263
      %v331 = vpop.f32.mrf.mxu0
      %v332 = vadd.f32 0.0, %v331
      %v333 = vpop.f32.mrf.mxu0
      %334 = vdwg.mxu0
      %v335 = vld [vmem:[%s5] sm:$0xff]
      %v336 = vld [vmem:[%s5 + $0x8] sm:$0xff]
      %v337 = vld [vmem:[%s5 + $0x10] sm:$0xff]
      %v338 = vld [vmem:[%s5 + $0x18] sm:$0xff]
      %v339 = vld [vmem:[%s5 + $0x20] sm:$0xff]
      %v340 = vld [vmem:[%s5 + $0x28] sm:$0xff]
      %v341 = vld [vmem:[%s5 + $0x30] sm:$0xff]
      %v342 = vld [vmem:[%s5 + $0x38] sm:$0xff]
      %v344 = vsel %vm261, %v332, 0
      %346 = vmatprep.subr.mxu0 0.0
      %347 = vmatpush1.msra.mxu0 0.0
      %348 = vmatprep.subr.mxu0 0.0
      %349 = vmatpush1.msra.mxu0 0.0
      %350 = vmatprep.subr.mxu0 0.0
      %351 = vmatpush1.msra.mxu0 0.0
      %352 = vmatprep.subr.mxu0 0.0
      %353 = vmatpush1.msra.mxu0 0.0
      %354 = vmatprep.subr.mxu0 0.0
      %355 = vmatpush1.msra.mxu0 0.0
      %356 = vmatprep.subr.mxu0 0.0
      %357 = vmatpush1.msra.mxu0 0.0
      %358 = vmatprep.subr.mxu0 0.0
      %359 = vmatpush1.msra.mxu0 0.0
      %360 = vmatprep.subr.mxu0 0.0
      %361 = vmatpush1.msra.mxu0 0.0
      %362 = vmatprep.subr.mxu0 0.0
      %363 = vmatpush1.msra.mxu0 %v342
      %364 = vmatprep.subr.mxu0 0.0
      %365 = vmatpush1.msra.mxu0 %v341
      %366 = vmatprep.subr.mxu0 0.0
      %367 = vmatpush1.msra.mxu0 %v340
      %368 = vmatprep.subr.mxu0 0.0
      %369 = vmatpush1.msra.mxu0 %v339
      %370 = vmatprep.subr.mxu0 0.0
      %371 = vmatpush1.msra.mxu0 %v338
      %372 = vmatprep.subr.mxu0 0.0
      %373 = vmatpush1.msra.mxu0 %v337
      %374 = vmatprep.subr.mxu0 0.0
      %375 = vmatpush1.msra.mxu0 %v336
      %376 = vmatprep.subr.mxu0 0.0
      %377 = vmatpush1.msra.mxu0 %v335
      %378 = vmatprep.subr.mxu0 0.0
      %379 = vmatpush2.msra.mxu0 0.0
      %380 = vmatprep.subr.mxu0 0.0
      %381 = vmatpush2.msra.mxu0 0.0
      %382 = vmatprep.subr.mxu0 0.0
      %383 = vmatpush2.msra.mxu0 0.0
      %384 = vmatprep.subr.mxu0 0.0
      %385 = vmatpush2.msra.mxu0 0.0
      %386 = vmatprep.subr.mxu0 0.0
      %387 = vmatpush2.msra.mxu0 0.0
      %388 = vmatprep.subr.mxu0 0.0
      %389 = vmatpush2.msra.mxu0 0.0
      %390 = vmatprep.subr.mxu0 0.0
      %391 = vmatpush2.msra.mxu0 0.0
      %392 = vmatprep.subr.mxu0 0.0
      %393 = vmatpush2.msra.mxu0 0.0
      %394 = vmatprep.subr.mxu0 0.0
      %395 = vmatpush2.msra.mxu0 0.0
      %396 = vmatprep.subr.mxu0 0.0
      %397 = vmatpush2.msra.mxu0 0.0
      %398 = vmatprep.subr.mxu0 0.0
      %399 = vmatpush2.msra.mxu0 0.0
      %400 = vmatprep.subr.mxu0 0.0
      %401 = vmatpush2.msra.mxu0 0.0
      %402 = vmatprep.subr.mxu0 0.0
      %403 = vmatpush2.msra.mxu0 0.0
      %404 = vmatprep.subr.mxu0 0.0
      %405 = vmatpush2.msra.mxu0 0.0
      %406 = vmatprep.subr.mxu0 0.0
      %407 = vmatpush2.msra.mxu0 0.0
      %408 = vmatprep.subr.mxu0 0.0
      %409 = vmatpush2.msra.mxu0 0.0
      %410 = vmatprep.mubr.f32.mxu0 0.0
      %411 = vmatmul.mubr.f32.gmra.mxu0 %v344
      %v412 = vpop.f32.mrf.mxu0
      %v413 = vadd.f32 0.0, %v412
      %v414 = vpop.f32.mrf.mxu0
      %415 = vdwg.mxu0
      %v416 = vsub.f32 %v332, %v413
      %v417 = vmul.f32 %v416, %v416
      %v419 = vsel %vm261, %v417, 0
      %421 = vmatprep.subr.mxu0 0.0
      %422 = vmatpush1.msra.mxu0 0.0
      %423 = vmatprep.subr.mxu0 0.0
      %424 = vmatpush1.msra.mxu0 0.0
      %425 = vmatprep.subr.mxu0 0.0
      %426 = vmatpush1.msra.mxu0 0.0
      %427 = vmatprep.subr.mxu0 0.0
      %428 = vmatpush1.msra.mxu0 0.0
      %429 = vmatprep.subr.mxu0 0.0
      %430 = vmatpush1.msra.mxu0 0.0
      %431 = vmatprep.subr.mxu0 0.0
      %432 = vmatpush1.msra.mxu0 0.0
      %433 = vmatprep.subr.mxu0 0.0
      %434 = vmatpush1.msra.mxu0 0.0
      %435 = vmatprep.subr.mxu0 0.0
      %436 = vmatpush1.msra.mxu0 0.0
      %437 = vmatprep.subr.mxu0 0.0
      %438 = vmatpush1.msra.mxu0 %v342
      %439 = vmatprep.subr.mxu0 0.0
      %440 = vmatpush1.msra.mxu0 %v341
      %441 = vmatprep.subr.mxu0 0.0
      %442 = vmatpush1.msra.mxu0 %v340
      %443 = vmatprep.subr.mxu0 0.0
      %444 = vmatpush1.msra.mxu0 %v339
      %445 = vmatprep.subr.mxu0 0.0
      %446 = vmatpush1.msra.mxu0 %v338
      %447 = vmatprep.subr.mxu0 0.0
      %448 = vmatpush1.msra.mxu0 %v337
      %449 = vmatprep.subr.mxu0 0.0
      %450 = vmatpush1.msra.mxu0 %v336
      %451 = vmatprep.subr.mxu0 0.0
      %452 = vmatpush1.msra.mxu0 %v335
      %453 = vmatprep.subr.mxu0 0.0
      %454 = vmatpush2.msra.mxu0 0.0
      %455 = vmatprep.subr.mxu0 0.0
      %456 = vmatpush2.msra.mxu0 0.0
      %457 = vmatprep.subr.mxu0 0.0
      %458 = vmatpush2.msra.mxu0 0.0
      %459 = vmatprep.subr.mxu0 0.0
      %460 = vmatpush2.msra.mxu0 0.0
      %461 = vmatprep.subr.mxu0 0.0
      %462 = vmatpush2.msra.mxu0 0.0
      %463 = vmatprep.subr.mxu0 0.0
      %464 = vmatpush2.msra.mxu0 0.0
      %465 = vmatprep.subr.mxu0 0.0
      %466 = vmatpush2.msra.mxu0 0.0
      %467 = vmatprep.subr.mxu0 0.0
      %468 = vmatpush2.msra.mxu0 0.0
      %469 = vmatprep.subr.mxu0 0.0
      %470 = vmatpush2.msra.mxu0 0.0
      %471 = vmatprep.subr.mxu0 0.0
      %472 = vmatpush2.msra.mxu0 0.0
      %473 = vmatprep.subr.mxu0 0.0
      %474 = vmatpush2.msra.mxu0 0.0
      %475 = vmatprep.subr.mxu0 0.0
      %476 = vmatpush2.msra.mxu0 0.0
      %477 = vmatprep.subr.mxu0 0.0
      %478 = vmatpush2.msra.mxu0 0.0
      %479 = vmatprep.subr.mxu0 0.0
      %480 = vmatpush2.msra.mxu0 0.0
      %481 = vmatprep.subr.mxu0 0.0
      %482 = vmatpush2.msra.mxu0 0.0
      %483 = vmatprep.subr.mxu0 0.0
      %484 = vmatpush2.msra.mxu0 0.0
      %485 = vmatprep.mubr.f32.mxu0 0.0
      %486 = vmatmul.mubr.f32.gmra.mxu0 %v419
      %v487 = vpop.f32.mrf.mxu0
      %v488 = vadd.f32 1e-05, %v487
      %v489 = vpop.f32.mrf.mxu0
      %490 = vdwg.mxu0
      %v491 = vrsqrt.pop %v488
      %v492 = vmul.f32 %v416, %v491
      %v493 = vld [vmem:[%s6] sm:$0xff]
      %v494 = vld [vmem:[%s6 + $0x8] sm:$0xff]
      %v495 = vld [vmem:[%s6 + $0x10] sm:$0xff]
      %v496 = vld [vmem:[%s6 + $0x18] sm:$0xff]
      %v497 = vld [vmem:[%s6 + $0x20] sm:$0xff]
      %v498 = vld [vmem:[%s6 + $0x28] sm:$0xff]
      %v499 = vld [vmem:[%s6 + $0x30] sm:$0xff]
      %v500 = vld [vmem:[%s6 + $0x38] sm:$0xff]
      %v502 = vsel %vm261, %v492, 0
      %504 = vmatprep.subr.mxu0 0.0
      %505 = vmatpush1.msra.mxu0 0.0
      %506 = vmatprep.subr.mxu0 0.0
      %507 = vmatpush1.msra.mxu0 0.0
      %508 = vmatprep.subr.mxu0 0.0
      %509 = vmatpush1.msra.mxu0 0.0
      %510 = vmatprep.subr.mxu0 0.0
      %511 = vmatpush1.msra.mxu0 0.0
      %512 = vmatprep.subr.mxu0 0.0
      %513 = vmatpush1.msra.mxu0 0.0
      %514 = vmatprep.subr.mxu0 0.0
      %515 = vmatpush1.msra.mxu0 0.0
      %516 = vmatprep.subr.mxu0 0.0
      %517 = vmatpush1.msra.mxu0 0.0
      %518 = vmatprep.subr.mxu0 0.0
      %519 = vmatpush1.msra.mxu0 0.0
      %520 = vmatprep.subr.mxu0 0.0
      %521 = vmatpush1.msra.mxu0 %v500
      %522 = vmatprep.subr.mxu0 0.0
      %523 = vmatpush1.msra.mxu0 %v499
      %524 = vmatprep.subr.mxu0 0.0
      %525 = vmatpush1.msra.mxu0 %v498
      %526 = vmatprep.subr.mxu0 0.0
      %527 = vmatpush1.msra.mxu0 %v497
      %528 = vmatprep.subr.mxu0 0.0
      %529 = vmatpush1.msra.mxu0 %v496
      %530 = vmatprep.subr.mxu0 0.0
      %531 = vmatpush1.msra.mxu0 %v495
      %532 = vmatprep.subr.mxu0 0.0
      %533 = vmatpush1.msra.mxu0 %v494
      %534 = vmatprep.subr.mxu0 0.0
      %535 = vmatpush1.msra.mxu0 %v493
      %536 = vmatprep.subr.mxu0 0.0
      %537 = vmatpush2.msra.mxu0 0.0
      %538 = vmatprep.subr.mxu0 0.0
      %539 = vmatpush2.msra.mxu0 0.0
      %540 = vmatprep.subr.mxu0 0.0
      %541 = vmatpush2.msra.mxu0 0.0
      %542 = vmatprep.subr.mxu0 0.0
      %543 = vmatpush2.msra.mxu0 0.0
      %544 = vmatprep.subr.mxu0 0.0
      %545 = vmatpush2.msra.mxu0 0.0
      %546 = vmatprep.subr.mxu0 0.0
      %547 = vmatpush2.msra.mxu0 0.0
      %548 = vmatprep.subr.mxu0 0.0
      %549 = vmatpush2.msra.mxu0 0.0
      %550 = vmatprep.subr.mxu0 0.0
      %551 = vmatpush2.msra.mxu0 0.0
      %552 = vmatprep.subr.mxu0 0.0
      %553 = vmatpush2.msra.mxu0 0.0
      %554 = vmatprep.subr.mxu0 0.0
      %555 = vmatpush2.msra.mxu0 0.0
      %556 = vmatprep.subr.mxu0 0.0
      %557 = vmatpush2.msra.mxu0 0.0
      %558 = vmatprep.subr.mxu0 0.0
      %559 = vmatpush2.msra.mxu0 0.0
      %560 = vmatprep.subr.mxu0 0.0
      %561 = vmatpush2.msra.mxu0 0.0
      %562 = vmatprep.subr.mxu0 0.0
      %563 = vmatpush2.msra.mxu0 0.0
      %564 = vmatprep.subr.mxu0 0.0
      %565 = vmatpush2.msra.mxu0 0.0
      %566 = vmatprep.subr.mxu0 0.0
      %567 = vmatpush2.msra.mxu0 0.0
      %568 = vmatprep.mubr.f32.mxu0 0.0
      %569 = vmatmul.mubr.f32.gmra.mxu0 %v502
      %v570 = vpop.f32.mrf.mxu0
      %v571 = vadd.f32 0.0, %v570
      %v572 = vpop.f32.mrf.mxu0
      %573 = vdwg.mxu0
      %v574 = vmax.f32 %v571, 0.0
      %v575 = vld [vmem:[#allocation7] sm:$0xff]
      %v576 = vld [vmem:[#allocation7 + $0x8] sm:$0xff]
      %v577 = vld [vmem:[#allocation7 + $0x10] sm:$0xff]
      %v578 = vld [vmem:[#allocation7 + $0x18] sm:$0xff]
      %v579 = vld [vmem:[#allocation7 + $0x20] sm:$0xff]
      %v580 = vld [vmem:[#allocation7 + $0x28] sm:$0xff]
      %v581 = vld [vmem:[#allocation7 + $0x30] sm:$0xff]
      %v582 = vld [vmem:[#allocation7 + $0x38] sm:$0xff]
      %583 = vmatprep.subr.mxu0 0.0
      %584 = vmatpush1.msra.mxu0 0.0
      %585 = vmatprep.subr.mxu0 0.0
      %586 = vmatpush1.msra.mxu0 0.0
      %587 = vmatprep.subr.mxu0 0.0
      %588 = vmatpush1.msra.mxu0 0.0
      %589 = vmatprep.subr.mxu0 0.0
      %590 = vmatpush1.msra.mxu0 0.0
      %591 = vmatprep.subr.mxu0 0.0
      %592 = vmatpush1.msra.mxu0 0.0
      %593 = vmatprep.subr.mxu0 0.0
      %594 = vmatpush1.msra.mxu0 0.0
      %595 = vmatprep.subr.mxu0 0.0
      %596 = vmatpush1.msra.mxu0 0.0
      %597 = vmatprep.subr.mxu0 0.0
      %598 = vmatpush1.msra.mxu0 0.0
      %599 = vmatprep.subr.mxu0 0.0
      %600 = vmatpush1.msra.mxu0 %v582
      %601 = vmatprep.subr.mxu0 0.0
      %602 = vmatpush1.msra.mxu0 %v581
      %603 = vmatprep.subr.mxu0 0.0
      %604 = vmatpush1.msra.mxu0 %v580
      %605 = vmatprep.subr.mxu0 0.0
      %606 = vmatpush1.msra.mxu0 %v579
      %607 = vmatprep.subr.mxu0 0.0
      %608 = vmatpush1.msra.mxu0 %v578
      %609 = vmatprep.subr.mxu0 0.0
      %610 = vmatpush1.msra.mxu0 %v577
      %611 = vmatprep.subr.mxu0 0.0
      %612 = vmatpush1.msra.mxu0 %v576
      %613 = vmatprep.subr.mxu0 0.0
      %614 = vmatpush1.msra.mxu0 %v575
      %615 = vmatprep.subr.mxu0 0.0
      %616 = vmatpush2.msra.mxu0 0.0
      %617 = vmatprep.subr.mxu0 0.0
      %618 = vmatpush2.msra.mxu0 0.0
      %619 = vmatprep.subr.mxu0 0.0
      %620 = vmatpush2.msra.mxu0 0.0
      %621 = vmatprep.subr.mxu0 0.0
      %622 = vmatpush2.msra.mxu0 0.0
      %623 = vmatprep.subr.mxu0 0.0
      %624 = vmatpush2.msra.mxu0 0.0
      %625 = vmatprep.subr.mxu0 0.0
      %626 = vmatpush2.msra.mxu0 0.0
      %627 = vmatprep.subr.mxu0 0.0
      %628 = vmatpush2.msra.mxu0 0.0
      %629 = vmatprep.subr.mxu0 0.0
      %630 = vmatpush2.msra.mxu0 0.0
      %631 = vmatprep.subr.mxu0 0.0
      %632 = vmatpush2.msra.mxu0 0.0
      %633 = vmatprep.subr.mxu0 0.0
      %634 = vmatpush2.msra.mxu0 0.0
      %635 = vmatprep.subr.mxu0 0.0
      %636 = vmatpush2.msra.mxu0 0.0
      %637 = vmatprep.subr.mxu0 0.0
      %638 = vmatpush2.msra.mxu0 0.0
      %639 = vmatprep.subr.mxu0 0.0
      %640 = vmatpush2.msra.mxu0 0.0
      %641 = vmatprep.subr.mxu0 0.0
      %642 = vmatpush2.msra.mxu0 0.0
      %643 = vmatprep.subr.mxu0 0.0
      %644 = vmatpush2.msra.mxu0 0.0
      %645 = vmatprep.subr.mxu0 0.0
      %646 = vmatpush2.msra.mxu0 0.0
      %647 = vmatprep.mubr.f32.mxu0 0.0
      %648 = vmatmul.mubr.f32.gmra.mxu0 %v502
      %v649 = vpop.f32.mrf.mxu0
      %v650 = vadd.f32 0.0, %v649
      %v651 = vpop.f32.mrf.mxu0
      %652 = vdwg.mxu0
      %v653 = vmul.f32 %v574, %v650
      %v654 = vld [vmem:[%s8] sm:$0x1]
      %v656 = vlaneseq
      %v657 = vshrl.u32 %v656, 7
      %v658 = vsub.s32 0, %v657
      %v659 = vrot.slane %v654, %v658
      %v661 = vmul.f32 %v653, %v659
      %v662 = vsel %vm261, %v661, 0.0
      %663 = vadd.xlane.f32.xlu0 %v662
      %v664 = vpop.xlane.xlu0 %663
      %s665 = sld [smem:[#allocation6]]
      %v666 = vstv %s665
      %v667 = vadd.f32 %v664, %v666
      %v668 = vmul.f32 %v667, 5.6
      %v669 = vsel %vm261, %v492, %v668
      %670 = vst [vmem:[#allocation10] sm:$0xff] %v669
    $region49: #{tpu_custom_call.1} parent=1 // pred_fallthru
      _
    // Predicated region
    $region50: #{tpu_custom_call.1} parent=1 // pred_check
      _
    $region51: #{tpu_custom_call.1} parent=1 // pred_check_branch
      %672 = sbr.rel (0) target = $region53
    $region52: #{tpu_custom_call.1} parent=1 // pred_region
      %s674 = ssub.s32 128, 128
      %675 = vsyncadd [#allocation9], %s674
      %s677 = sshll.u32 [#allocation10], 4
      %s678 = int_to_ptr.vmem [resolvable:$true] %s677
      %680 = dma.vmem_to_hbm [thread:$0]  %s678, 128, %s10, [#allocation9]
    $region53: #{tpu_custom_call.1} parent=1 // pred_fallthru
      _
    // Predicated region
    $region54: #{tpu_custom_call.1} parent=1 // pred_check
      _
    $region55: #{tpu_custom_call.1} parent=1 // pred_check_branch
      %682 = sbr.rel (0) target = $region57
    $region56: #{tpu_custom_call.1} parent=1 // pred_region
      %683 = dma.done [#allocation9], 128
    $region57: #{tpu_custom_call.1} parent=1 // pred_fallthru
      _
    %684 = vsyncpa [#allocation8], 1
    %685 = vsyncpa [#allocation9], 1

</llo_original>
